<compile_context>
chip_gen: v5e
topology: v5e:2x2
jax: 0.10.0
libtpu: 0.0.40
codegen_flags: <defaults>
</compile_context>

<pallas_src>
import jax
import jax.numpy as jnp
from jax.experimental import pallas as pl
from jax.experimental.pallas import tpu as pltpu


def _round_up(n, m):
    return (n + m - 1) // m * m


def visnet_kernel(xt_ref, w1_ref, b1_ref, w2d_ref, b2d_ref, o_ref):
    # xt:  (20, TILE_B)  bf16   input tile, batch on the lane axis
    # w1:  (100, 20)     bf16   fc1 weight in PyTorch (out, in) layout
    # b1:  (100, 1)      f32    fc1 bias as a column
    # w2d: (100, 1)      f32    fc2 weight-row difference (w2[0] - w2[1])
    # b2d: (1, 1)        f32    fc2 bias difference (b2[0] - b2[1])
    # o:   (2, TILE_B)   f32    [p(class 0); p(class 1)], batch on lanes

    # fc1 + ReLU: (100, 20) @ (20, TILE_B) -> (100, TILE_B), f32 accumulation.
    h = jnp.dot(w1_ref[...], xt_ref[...], preferred_element_type=jnp.float32)
    h = jnp.maximum(h + b1_ref[...], 0.0)

    # fc2 logit difference (l0 - l1): VPU multiply + sublane reduce, no 2-wide
    # MXU matmul and no lane-axis softmax max/sum.
    d = jnp.sum(h * w2d_ref[...], axis=0, keepdims=True) + b2d_ref[...]  # (1, TILE_B)

    # softmax over 2 classes == sigmoid(l0 - l1); tanh form runs on the EUP.
    p0 = 0.5 * (jnp.tanh(0.5 * d) + 1.0)
    o_ref[0:1, :] = p0
    o_ref[1:2, :] = 1.0 - p0


def visnet_forward(x, w1, b1, w2, b2, *, tile_b=512):
    """VisNet forward pass.

    x:  (B, 20) float32
    w1: (100, 20), b1: (100,)   -- PyTorch nn.Linear(20, 100) layout
    w2: (2, 100),  b2: (2,)     -- PyTorch nn.Linear(100, 2) layout
    Returns (B, 2) float32 softmax probabilities.
    """
    assert tile_b % 128 == 0
    B, f_in = x.shape
    hidden = w1.shape[0]
    n_cls = w2.shape[0]

    tb = min(tile_b, _round_up(B, 128))
    Bp = _round_up(B, tb)
    n_tiles = Bp // tb

    # Wrapper-side layout plumbing (fused pad + transpose + cast in XLA).
    xt = jnp.pad(x, ((0, Bp - B), (0, 0))).T.astype(jnp.bfloat16)     # (20, Bp)
    w1b = w1.astype(jnp.bfloat16)                                     # (100, 20)
    b1c = b1.reshape(hidden, 1).astype(jnp.float32)                   # (100, 1)
    w2d = (w2[0] - w2[1]).reshape(hidden, 1).astype(jnp.float32)      # (100, 1)
    b2d = (b2[0] - b2[1]).reshape(1, 1).astype(jnp.float32)           # (1, 1)

    flops = 2 * Bp * (f_in * hidden + hidden)
    bytes_accessed = (xt.size * xt.dtype.itemsize
                      + w1b.size * 2
                      + (b1c.size + w2d.size + b2d.size) * 4
                      + n_cls * Bp * 4)

    vmem = pltpu.MemorySpace.VMEM
    out_t = pl.pallas_call(
        visnet_kernel,
        out_shape=jax.ShapeDtypeStruct((n_cls, Bp), jnp.float32),
        grid=(n_tiles,),
        in_specs=[
            pl.BlockSpec((f_in, tb), lambda i: (0, i), memory_space=vmem),
            pl.BlockSpec((hidden, f_in), lambda i: (0, 0), memory_space=vmem),
            pl.BlockSpec((hidden, 1), lambda i: (0, 0), memory_space=vmem),
            pl.BlockSpec((hidden, 1), lambda i: (0, 0), memory_space=vmem),
            pl.BlockSpec((1, 1), lambda i: (0, 0), memory_space=vmem),
        ],
        out_specs=pl.BlockSpec((n_cls, tb), lambda i: (0, i), memory_space=vmem),
        compiler_params=pltpu.CompilerParams(
            dimension_semantics=("parallel",)),
        cost_estimate=pl.CostEstimate(
            flops=flops, transcendentals=Bp, bytes_accessed=bytes_accessed),
    )(xt, w1b, b1c, w2d, b2d)

    # (2, Bp) -> (B, 2): tiny transpose + un-pad outside the kernel.
    return out_t.T[:B]


def init_params(key):
    """Deterministic init matching PyTorch nn.Linear shapes / default init.

    fc1: Linear(20, 100) -> w1 (100, 20), b1 (100,)
    fc2: Linear(100, 2)  -> w2 (2, 100),  b2 (2,)
    """
    k1, k2, k3, k4 = jax.random.split(key, 4)
    lim1 = 1.0 / jnp.sqrt(20.0)
    lim2 = 1.0 / jnp.sqrt(100.0)
    w1 = jax.random.uniform(k1, (100, 20), jnp.float32, -lim1, lim1)
    b1 = jax.random.uniform(k2, (100,), jnp.float32, -lim1, lim1)
    w2 = jax.random.uniform(k3, (2, 100), jnp.float32, -lim2, lim2)
    b2 = jax.random.uniform(k4, (2,), jnp.float32, -lim2, lim2)
    return w1, b1, w2, b2


if __name__ == "__main__":
    key = jax.random.PRNGKey(0)
    kx, kp = jax.random.split(key)

    # Small batch of inputs with 20 features (matches Linear(20, ...)).
    B = 8
    x = jax.random.normal(kx, (B, 20), jnp.float32)
    w1, b1, w2, b2 = init_params(kp)

    fwd = jax.jit(visnet_forward)
    out = jax.block_until_ready(fwd(x, w1, b1, w2, b2))

    # Pure-JAX reference using the same bf16-rounded x / w1 as the kernel.
    xr = x.astype(jnp.bfloat16).astype(jnp.float32)
    w1r = w1.astype(jnp.bfloat16).astype(jnp.float32)
    h_ref = jnp.maximum(xr @ w1r.T + b1, 0.0)
    logits = jnp.dot(h_ref, w2.T, precision=jax.lax.Precision.HIGHEST) + b2
    ref = jax.nn.softmax(logits, axis=-1)

    assert out.shape == (B, 2)
    assert jnp.allclose(jnp.sum(out, axis=-1), 1.0, atol=1e-5)
    assert jnp.allclose(out, ref, atol=1e-3), "mismatch vs reference"

    print("KERNEL_OK")
</pallas_src>

<mosaic_0001>
module attributes {stable_mosaic.version = 11 : i64} {
  func.func @visnet_kernel(%arg0: i32, %arg1: memref<20x128xbf16, #tpu.memory_space<vmem>>, %arg2: memref<100x20xbf16, #tpu.memory_space<vmem>>, %arg3: memref<100x1xf32, #tpu.memory_space<vmem>>, %arg4: memref<100x1xf32, #tpu.memory_space<vmem>>, %arg5: memref<1x1xf32, #tpu.memory_space<vmem>>, %arg6: memref<2x128xf32, #tpu.memory_space<vmem>>) attributes {dimension_semantics = [#tpu.dimension_semantics<parallel>], iteration_bounds = array<i64: 1>, scalar_prefetch = 0 : i64, scratch_operands = 0 : i64, tpu.core_type = #tpu.core_type<tc>, window_params = [{transform_indices = @transform_0, window_bounds = array<i64: 20, 128>}, {pipeline_mode = #tpu.pipeline_mode<synchronous>, transform_indices = @transform_1, window_bounds = array<i64: 100, 20>}, {pipeline_mode = #tpu.pipeline_mode<synchronous>, transform_indices = @transform_2, window_bounds = array<i64: 100, 1>}, {pipeline_mode = #tpu.pipeline_mode<synchronous>, transform_indices = @transform_3, window_bounds = array<i64: 100, 1>}, {pipeline_mode = #tpu.pipeline_mode<synchronous>, transform_indices = @transform_4, window_bounds = array<i64: 1, 1>}, {transform_indices = @transform_5, window_bounds = array<i64: 2, 128>}]} {
    %c0 = arith.constant 0 : index
    %c0_0 = arith.constant 0 : index
    %0 = vector.load %arg2[%c0, %c0_0] : memref<100x20xbf16, #tpu.memory_space<vmem>>, vector<100x20xbf16>
    %c0_1 = arith.constant 0 : index
    %c0_2 = arith.constant 0 : index
    %1 = vector.load %arg1[%c0_1, %c0_2] : memref<20x128xbf16, #tpu.memory_space<vmem>>, vector<20x128xbf16>
    %cst = arith.constant dense<0.000000e+00> : vector<100x128xf32>
    %2 = tpu.matmul %0, %1, %cst {dimension_numbers = #tpu.dot_dimension_numbers<[1], [0], [0], [1], [0, 0, 1, 1], [], []>} : vector<100x20xbf16>, vector<20x128xbf16>, vector<100x128xf32> -> vector<100x128xf32>
    %c0_3 = arith.constant 0 : index
    %c0_4 = arith.constant 0 : index
    %3 = vector.load %arg3[%c0_3, %c0_4] : memref<100x1xf32, #tpu.memory_space<vmem>>, vector<100x1xf32>
    %4 = vector.broadcast %3 : vector<100x1xf32> to vector<100x128xf32>
    %5 = arith.addf %2, %4 : vector<100x128xf32>
    %cst_5 = arith.constant 0.000000e+00 : f32
    %6 = vector.broadcast %cst_5 : f32 to vector<100x128xf32>
    %7 = arith.maximumf %5, %6 : vector<100x128xf32>
    %c0_6 = arith.constant 0 : index
    %c0_7 = arith.constant 0 : index
    %8 = vector.load %arg4[%c0_6, %c0_7] : memref<100x1xf32, #tpu.memory_space<vmem>>, vector<100x1xf32>
    %9 = vector.broadcast %8 : vector<100x1xf32> to vector<100x128xf32>
    %10 = arith.mulf %7, %9 : vector<100x128xf32>
    %cst_8 = arith.constant dense<0.000000e+00> : vector<128xf32>
    %11 = vector.multi_reduction <add>, %10, %cst_8 [0] : vector<100x128xf32> to vector<128xf32>
    %12 = vector.shape_cast %11 : vector<128xf32> to vector<1x128xf32>
    %c0_9 = arith.constant 0 : index
    %c0_10 = arith.constant 0 : index
    %13 = vector.load %arg5[%c0_9, %c0_10] : memref<1x1xf32, #tpu.memory_space<vmem>>, vector<1x1xf32>
    %14 = vector.broadcast %13 : vector<1x1xf32> to vector<1x128xf32>
    %15 = arith.addf %12, %14 : vector<1x128xf32>
    %cst_11 = arith.constant 5.000000e-01 : f32
    %16 = vector.broadcast %cst_11 : f32 to vector<1x128xf32>
    %17 = arith.mulf %16, %15 : vector<1x128xf32>
    %18 = math.tanh %17 : vector<1x128xf32>
    %cst_12 = arith.constant 1.000000e+00 : f32
    %19 = vector.broadcast %cst_12 : f32 to vector<1x128xf32>
    %20 = arith.addf %18, %19 : vector<1x128xf32>
    %cst_13 = arith.constant 5.000000e-01 : f32
    %21 = vector.broadcast %cst_13 : f32 to vector<1x128xf32>
    %22 = arith.mulf %21, %20 : vector<1x128xf32>
    %c0_14 = arith.constant 0 : index
    %c0_15 = arith.constant 0 : index
    %23 = vector.load %arg6[%c0_14, %c0_15] : memref<2x128xf32, #tpu.memory_space<vmem>>, vector<1x128xf32>
    tpu.vector_store %arg6[%c0_14, %c0_15], %22 {strides = array<i32>} : memref<2x128xf32, #tpu.memory_space<vmem>>, vector<1x128xf32>,
    %cst_16 = arith.constant 1.000000e+00 : f32
    %24 = vector.broadcast %cst_16 : f32 to vector<1x128xf32>
    %25 = arith.subf %24, %22 : vector<1x128xf32>
    %c1 = arith.constant 1 : index
    %c0_17 = arith.constant 0 : index
    %26 = vector.load %arg6[%c1, %c0_17] : memref<2x128xf32, #tpu.memory_space<vmem>>, vector<1x128xf32>
    tpu.vector_store %arg6[%c1, %c0_17], %25 {strides = array<i32>} : memref<2x128xf32, #tpu.memory_space<vmem>>, vector<1x128xf32>,
    return
  }
  func.func @transform_0(%arg0: i32) -> (i32, i32) {
    %c0_i32 = arith.constant 0 : i32
    %c0_i32_0 = arith.constant 0 : i32
    return %c0_i32, %arg0 : i32, i32
  }
  func.func @transform_1(%arg0: i32) -> (i32, i32) {
    %c0_i32 = arith.constant 0 : i32
    %c0_i32_0 = arith.constant 0 : i32
    %c0_i32_1 = arith.constant 0 : i32
    return %c0_i32, %c0_i32_0 : i32, i32
  }
  func.func @transform_2(%arg0: i32) -> (i32, i32) {
    %c0_i32 = arith.constant 0 : i32
    %c0_i32_0 = arith.constant 0 : i32
    %c0_i32_1 = arith.constant 0 : i32
    return %c0_i32, %c0_i32_0 : i32, i32
  }
  func.func @transform_3(%arg0: i32) -> (i32, i32) {
    %c0_i32 = arith.constant 0 : i32
    %c0_i32_0 = arith.constant 0 : i32
    %c0_i32_1 = arith.constant 0 : i32
    return %c0_i32, %c0_i32_0 : i32, i32
  }
  func.func @transform_4(%arg0: i32) -> (i32, i32) {
    %c0_i32 = arith.constant 0 : i32
    %c0_i32_0 = arith.constant 0 : i32
    %c0_i32_1 = arith.constant 0 : i32
    return %c0_i32, %c0_i32_0 : i32, i32
  }
  func.func @transform_5(%arg0: i32) -> (i32, i32) {
    %c0_i32 = arith.constant 0 : i32
    %c0_i32_0 = arith.constant 0 : i32
    return %c0_i32, %arg0 : i32, i32
  }
}

</mosaic_0001>

<llo_original>
// kernel: visnet_forward.1
$region0: #{visnet_forward.1}
  #allocation0 [shape = 'u32[]', space=smem, size = 0x4, offset = 0x4, fixed_abs, tag = 'smem constant byte address 0x4 - core index']
  #allocation1 [shape = 'u32[72,128]{1,0:T(1,128)}', space=vmem, size = 0x9000, scoped, tag = 'internal scratch']
  #allocation2 [shape = 'f32[1,1]{1,0:T(1,128)S(1)}', space=vmem, size = 0x200, scoped, tag = 'scoped memory for visnet_forward.1']
  %s0 = inlined_call_operand.vmem [shape: bf16[20,128], index: 0, kind: input, shape index: {}]
  %s1 = inlined_call_operand.vmem [shape: bf16[100,20], index: 1, kind: input, shape index: {}]
  %s2 = inlined_call_operand.vmem [shape: f32[100,1], index: 2, kind: input, shape index: {}]
  %s3 = inlined_call_operand.vmem [shape: f32[100,1], index: 3, kind: input, shape index: {}]
  %s4 = inlined_call_operand.<no memory space> [shape: f32[1,1], index: 4, kind: input, shape index: {}]
  %s5 = inlined_call_operand.hbm [shape: f32[2,128], index: 5, kind: output, shape index: {}]
  %s6 = sld [smem:[#allocation0]]
  $region30: #{visnet_forward.1} parent=0
    _
  %s8 = ssub.s32 1, %s6
  %s9 = scalar_select 0, %s8, %s6
  %v10 = vstv %s4
  %11 = vst [vmem:[#allocation2] sm:$0x1] %v10
  $region1: #{visnet_forward.1} parent=0
    #allocation3 [shape = 'u8[1024]{0}', space=vmem, size = 0x400, scoped, tag = 'output window, operand 0, single buffered']
    #allocation4 [shape = 's32[1]{0}', space=sflag, size = 0x4, scoped, tag = 'scoped memory for visnet_forward.1']
    %12 = vsyncpa [#allocation4], 0
    // Predicated region
    $region2: #{visnet_forward.1} parent=1 // pred_check
      _
    $region3: #{visnet_forward.1} parent=1 // pred_check_branch
      %14 = sbr.rel (0) target = $region5
    $region4: #{visnet_forward.1} parent=1 // pred_region
      _
    $region5: #{visnet_forward.1} parent=1 // pred_fallthru
      _
    // Predicated region
    $region6: #{visnet_forward.1} parent=1 // pred_check
      _
    $region7: #{visnet_forward.1} parent=1 // pred_check_branch
      %16 = sbr.rel (0) target = $region9
    $region8: #{visnet_forward.1} parent=1 // pred_region
      _
    $region9: #{visnet_forward.1} parent=1 // pred_fallthru
      _
    // Predicated region
    $region10: #{visnet_forward.1} parent=1 // pred_check
      _
    $region11: #{visnet_forward.1} parent=1 // pred_check_branch
      %18 = sbr.rel (0) target = $region13
    $region12: #{visnet_forward.1} parent=1 // pred_region
      _
    $region13: #{visnet_forward.1} parent=1 // pred_fallthru
      _
    // Predicated region
    $region14: #{visnet_forward.1} parent=1 // pred_check
      _
    $region15: #{visnet_forward.1} parent=1 // pred_check_branch
      %20 = sbr.rel (0) target = $region17
    $region16: #{visnet_forward.1} parent=1 // pred_region
      _
    $region17: #{visnet_forward.1} parent=1 // pred_fallthru
      _
    // Predicated region
    $region18: #{visnet_forward.1} parent=1 // pred_check
      _
    $region19: #{visnet_forward.1} parent=1 // pred_check_branch
      %22 = sbr.rel (0) target = $region21
    $region20: #{visnet_forward.1} parent=1 // pred_region
      _
    $region21: #{visnet_forward.1} parent=1 // pred_fallthru
      _
    %v24 = vld [vmem:[%s1] sm:$0xf]
    %v25 = vld [vmem:[%s1 + $0x4] sm:$0xf]
    %v26 = vld [vmem:[%s1 + $0x8] sm:$0xf]
    %v27 = vld [vmem:[%s1 + $0xc] sm:$0xf]
    %v28 = vld [vmem:[%s1 + $0x10] sm:$0xf]
    %v29 = vld [vmem:[%s1 + $0x14] sm:$0xf]
    %v30 = vld [vmem:[%s1 + $0x18] sm:$0xf]
    %v31 = vld [vmem:[%s1 + $0x1c] sm:$0xf]
    %v32 = vld [vmem:[%s1 + $0x20] sm:$0xf]
    %v33 = vld [vmem:[%s1 + $0x24] sm:$0xf]
    %v34 = vld [vmem:[%s1 + $0x28] sm:$0xf]
    %v35 = vld [vmem:[%s1 + $0x2c] sm:$0xf]
    %v36 = vld [vmem:[%s1 + $0x30] sm:$0x3]
    %v37 = vld [vmem:[%s0] sm:$0xf]
    %v38 = vld [vmem:[%s0 + $0x4] sm:$0xf]
    %v39 = vld [vmem:[%s0 + $0x8] sm:$0x3]
    %v40 = vld [vmem:[%s2] sm:$0xff]
    %v41 = vld [vmem:[%s2 + $0x8] sm:$0xff]
    %v42 = vld [vmem:[%s2 + $0x10] sm:$0xff]
    %v43 = vld [vmem:[%s2 + $0x18] sm:$0xff]
    %v44 = vld [vmem:[%s2 + $0x20] sm:$0xff]
    %v45 = vld [vmem:[%s2 + $0x28] sm:$0xff]
    %v46 = vld [vmem:[%s2 + $0x30] sm:$0xff]
    %v47 = vld [vmem:[%s2 + $0x38] sm:$0xff]
    %v48 = vld [vmem:[%s2 + $0x40] sm:$0xff]
    %v49 = vld [vmem:[%s2 + $0x48] sm:$0xff]
    %v50 = vld [vmem:[%s2 + $0x50] sm:$0xff]
    %v51 = vld [vmem:[%s2 + $0x58] sm:$0xff]
    %v52 = vld [vmem:[%s2 + $0x60] sm:$0xf]
    %54 = vset.pattern.permute.xlu0 0
    %55 = vperm.xlu0 %54, %v40
    %v56 = vpop.permute.xlu0 %55
    %59 = vset.pattern.permute.xlu0 0
    %60 = vperm.xlu0 %59, %v41
    %v61 = vpop.permute.xlu0 %60
    %64 = vset.pattern.permute.xlu0 0
    %65 = vperm.xlu0 %64, %v42
    %v66 = vpop.permute.xlu0 %65
    %69 = vset.pattern.permute.xlu0 0
    %70 = vperm.xlu0 %69, %v43
    %v71 = vpop.permute.xlu0 %70
    %74 = vset.pattern.permute.xlu0 0
    %75 = vperm.xlu0 %74, %v44
    %v76 = vpop.permute.xlu0 %75
    %79 = vset.pattern.permute.xlu0 0
    %80 = vperm.xlu0 %79, %v45
    %v81 = vpop.permute.xlu0 %80
    %84 = vset.pattern.permute.xlu0 0
    %85 = vperm.xlu0 %84, %v46
    %v86 = vpop.permute.xlu0 %85
    %89 = vset.pattern.permute.xlu0 0
    %90 = vperm.xlu0 %89, %v47
    %v91 = vpop.permute.xlu0 %90
    %94 = vset.pattern.permute.xlu0 0
    %95 = vperm.xlu0 %94, %v48
    %v96 = vpop.permute.xlu0 %95
    %99 = vset.pattern.permute.xlu0 0
    %100 = vperm.xlu0 %99, %v49
    %v101 = vpop.permute.xlu0 %100
    %104 = vset.pattern.permute.xlu0 0
    %105 = vperm.xlu0 %104, %v50
    %v106 = vpop.permute.xlu0 %105
    %109 = vset.pattern.permute.xlu0 0
    %110 = vperm.xlu0 %109, %v51
    %v111 = vpop.permute.xlu0 %110
    %114 = vset.pattern.permute.xlu0 0
    %115 = vperm.xlu0 %114, %v52
    %v116 = vpop.permute.xlu0 %115
    %v131 = vunpack.c.l.b16 %v24
    %v132 = vunpack.c.l.b16 %v25
    %v133 = vunpack.c.l.b16 %v26
    %v134 = vunpack.c.l.b16 %v27
    %v135 = vunpack.c.l.b16 %v28
    %v136 = vunpack.c.l.b16 %v29
    %v137 = vunpack.c.l.b16 %v30
    %v138 = vunpack.c.l.b16 %v31
    %v139 = vunpack.c.l.b16 %v32
    %v140 = vunpack.c.l.b16 %v33
    %v141 = vunpack.c.l.b16 %v34
    %v142 = vunpack.c.l.b16 %v35
    %v143 = vunpack.c.l.b16 %v36
    %v144 = vpack.c.b16 %v132, %v131
    %v145 = vpack.c.b16 %v134, %v133
    %v146 = vpack.c.b16 %v136, %v135
    %v147 = vpack.c.b16 %v138, %v137
    %v148 = vpack.c.b16 %v140, %v139
    %v149 = vpack.c.b16 %v142, %v141
    %v150 = vpack.c.b16 %v143, %v143
    %v154 = vunpack.c.l.b16 %v37
    %v155 = vunpack.c.l.b16 %v38
    %v156 = vunpack.c.l.b16 %v39
    %v157 = vpack.c.b16 %v155, %v154
    %v158 = vpack.c.b16 %v156, %v156
    %vm160 = vcmask 162816
    %v162 = vsel %vm160, %v144, 0
    %v165 = vsel %vm160, %v145, 0
    %v168 = vsel %vm160, %v146, 0
    %v171 = vsel %vm160, %v147, 0
    %v174 = vsel %vm160, %v148, 0
    %v177 = vsel %vm160, %v149, 0
    %v180 = vsel %vm160, %v150, 0
    %vm182 = vcmask 1041408
    %v184 = vsel %vm182, %v158, 0
    %186 = vmatpush.bf16.msra.mxu0 0
    %187 = vmatpush.bf16.msra.mxu0 0
    %188 = vmatpush.bf16.msra.mxu0 0
    %189 = vmatpush.bf16.msra.mxu0 0
    %190 = vmatpush.bf16.msra.mxu0 0
    %191 = vmatpush.bf16.msra.mxu0 0
    %192 = vmatpush.bf16.msra.mxu0 %v184
    %193 = vmatpush.bf16.msra.mxu0 %v157
    %194 = vmatmul.bf16.gmra.mxu0 %v162
    %v195 = vpop.f32.mrf.mxu0
    %v196 = vadd.f32 %v56, %v195
    %v197 = vpop.f32.mrf.mxu0
    %v198 = vadd.f32 %v61, %v197
    %199 = vmatmul.bf16.gmra.mxu0 %v165
    %v200 = vpop.f32.mrf.mxu0
    %v201 = vadd.f32 %v66, %v200
    %v202 = vpop.f32.mrf.mxu0
    %v203 = vadd.f32 %v71, %v202
    %204 = vmatmul.bf16.gmra.mxu0 %v168
    %v205 = vpop.f32.mrf.mxu0
    %v206 = vadd.f32 %v76, %v205
    %v207 = vpop.f32.mrf.mxu0
    %v208 = vadd.f32 %v81, %v207
    %209 = vmatmul.bf16.gmra.mxu0 %v171
    %v210 = vpop.f32.mrf.mxu0
    %v211 = vadd.f32 %v86, %v210
    %v212 = vpop.f32.mrf.mxu0
    %v213 = vadd.f32 %v91, %v212
    %214 = vmatmul.bf16.gmra.mxu0 %v174
    %v215 = vpop.f32.mrf.mxu0
    %v216 = vadd.f32 %v96, %v215
    %v217 = vpop.f32.mrf.mxu0
    %v218 = vadd.f32 %v101, %v217
    %219 = vmatmul.bf16.gmra.mxu0 %v177
    %v220 = vpop.f32.mrf.mxu0
    %v221 = vadd.f32 %v106, %v220
    %v222 = vpop.f32.mrf.mxu0
    %v223 = vadd.f32 %v111, %v222
    %224 = vmatmul.bf16.gmra.mxu0 %v180
    %v225 = vpop.f32.mrf.mxu0
    %v226 = vadd.f32 %v116, %v225
    %v227 = vpop.f32.mrf.mxu0
    %228 = vdwg.mxu0
    %v229 = vmax.f32 %v196, 0.0
    %v230 = vmax.f32 %v198, 0.0
    %v231 = vmax.f32 %v201, 0.0
    %v232 = vmax.f32 %v203, 0.0
    %v233 = vmax.f32 %v206, 0.0
    %v234 = vmax.f32 %v208, 0.0
    %v235 = vmax.f32 %v211, 0.0
    %v236 = vmax.f32 %v213, 0.0
    %v237 = vmax.f32 %v216, 0.0
    %v238 = vmax.f32 %v218, 0.0
    %v239 = vmax.f32 %v221, 0.0
    %v240 = vmax.f32 %v223, 0.0
    %v241 = vmax.f32 %v226, 0.0
    %v242 = vld [vmem:[%s3] sm:$0xff]
    %v243 = vld [vmem:[%s3 + $0x8] sm:$0xff]
    %v244 = vld [vmem:[%s3 + $0x10] sm:$0xff]
    %v245 = vld [vmem:[%s3 + $0x18] sm:$0xff]
    %v246 = vld [vmem:[%s3 + $0x20] sm:$0xff]
    %v247 = vld [vmem:[%s3 + $0x28] sm:$0xff]
    %v248 = vld [vmem:[%s3 + $0x30] sm:$0xff]
    %v249 = vld [vmem:[%s3 + $0x38] sm:$0xff]
    %v250 = vld [vmem:[%s3 + $0x40] sm:$0xff]
    %v251 = vld [vmem:[%s3 + $0x48] sm:$0xff]
    %v252 = vld [vmem:[%s3 + $0x50] sm:$0xff]
    %v253 = vld [vmem:[%s3 + $0x58] sm:$0xff]
    %v254 = vld [vmem:[%s3 + $0x60] sm:$0xf]
    %256 = vset.pattern.permute.xlu0 0
    %257 = vperm.xlu0 %256, %v242
    %v258 = vpop.permute.xlu0 %257
    %261 = vset.pattern.permute.xlu0 0
    %262 = vperm.xlu0 %261, %v243
    %v263 = vpop.permute.xlu0 %262
    %266 = vset.pattern.permute.xlu0 0
    %267 = vperm.xlu0 %266, %v244
    %v268 = vpop.permute.xlu0 %267
    %271 = vset.pattern.permute.xlu0 0
    %272 = vperm.xlu0 %271, %v245
    %v273 = vpop.permute.xlu0 %272
    %276 = vset.pattern.permute.xlu0 0
    %277 = vperm.xlu0 %276, %v246
    %v278 = vpop.permute.xlu0 %277
    %281 = vset.pattern.permute.xlu0 0
    %282 = vperm.xlu0 %281, %v247
    %v283 = vpop.permute.xlu0 %282
    %286 = vset.pattern.permute.xlu0 0
    %287 = vperm.xlu0 %286, %v248
    %v288 = vpop.permute.xlu0 %287
    %291 = vset.pattern.permute.xlu0 0
    %292 = vperm.xlu0 %291, %v249
    %v293 = vpop.permute.xlu0 %292
    %296 = vset.pattern.permute.xlu0 0
    %297 = vperm.xlu0 %296, %v250
    %v298 = vpop.permute.xlu0 %297
    %301 = vset.pattern.permute.xlu0 0
    %302 = vperm.xlu0 %301, %v251
    %v303 = vpop.permute.xlu0 %302
    %306 = vset.pattern.permute.xlu0 0
    %307 = vperm.xlu0 %306, %v252
    %v308 = vpop.permute.xlu0 %307
    %311 = vset.pattern.permute.xlu0 0
    %312 = vperm.xlu0 %311, %v253
    %v313 = vpop.permute.xlu0 %312
    %316 = vset.pattern.permute.xlu0 0
    %317 = vperm.xlu0 %316, %v254
    %v318 = vpop.permute.xlu0 %317
    %v320 = vmul.f32 %v229, %v258
    %v321 = vmul.f32 %v230, %v263
    %v322 = vmul.f32 %v231, %v268
    %v323 = vmul.f32 %v232, %v273
    %v324 = vmul.f32 %v233, %v278
    %v325 = vmul.f32 %v234, %v283
    %v326 = vmul.f32 %v235, %v288
    %v327 = vmul.f32 %v236, %v293
    %v328 = vmul.f32 %v237, %v298
    %v329 = vmul.f32 %v238, %v303
    %v330 = vmul.f32 %v239, %v308
    %v331 = vmul.f32 %v240, %v313
    %v332 = vmul.f32 %v241, %v318
    %v333 = vadd.f32 %v320, %v321
    %v334 = vadd.f32 %v333, %v322
    %v335 = vadd.f32 %v334, %v323
    %v336 = vadd.f32 %v335, %v324
    %v337 = vadd.f32 %v336, %v325
    %v338 = vadd.f32 %v337, %v326
    %v339 = vadd.f32 %v338, %v327
    %v340 = vadd.f32 %v339, %v328
    %v341 = vadd.f32 %v340, %v329
    %v342 = vadd.f32 %v341, %v330
    %v343 = vadd.f32 %v342, %v331
    %vm344 = vcmask 1043456
    %v345 = vsel %vm344, %v332, 0.0
    %v346 = vadd.f32 %v343, %v345
    %v347 = vrot.slane %v346, 4
    %v348 = vadd.f32 %v346, %v347
    %v349 = vrot.slane %v348, 2
    %v350 = vadd.f32 %v348, %v349
    %v351 = vrot.slane %v350, 1
    %v352 = vadd.f32 %v350, %v351
    %v353 = vld [vmem:[#allocation2] sm:$0x1]
    %355 = vset.pattern.permute.xlu0 0
    %356 = vperm.xlu0 %355, %v353
    %v357 = vpop.permute.xlu0 %356
    %v359 = vperm.slane %v357, 0
    %v360 = vadd.f32 %v352, %v359
    %v361 = vmul.f32 %v360, 0.5
    %v362 = vtanh.pop %v361
    %v363 = vadd.f32 %v362, 1.0
    %v364 = vmul.f32 %v363, 0.5
    %365 = vst [vmem:[#allocation3] sm:$0x1] %v364
    %v366 = vsub.f32 1.0, %v364
    %367 = vst [vmem:[#allocation3 + $0x1] sm:$0x1] %v366
    // Predicated region
    $region22: #{visnet_forward.1} parent=1 // pred_check
      _
    $region23: #{visnet_forward.1} parent=1 // pred_check_branch
      %369 = sbr.rel (0) target = $region25
    $region24: #{visnet_forward.1} parent=1 // pred_region
      %371 = vsyncadd [#allocation4], 0
      %s373 = sshll.u32 [#allocation3], 4
      %s374 = int_to_ptr.vmem [resolvable:$true] %s373
      %s375 = sshll.u32 %s5, 4
      %s376 = int_to_ptr.hbm [resolvable:$true] %s375
      %378 = dma.vmem_to_hbm [thread:$0]  %s374, 32, %s376, [#allocation4]
    $region25: #{visnet_forward.1} parent=1 // pred_fallthru
      _
    // Predicated region
    $region26: #{visnet_forward.1} parent=1 // pred_check
      _
    $region27: #{visnet_forward.1} parent=1 // pred_check_branch
      %380 = sbr.rel (0) target = $region29
    $region28: #{visnet_forward.1} parent=1 // pred_region
      %382 = dma.done [#allocation4], 32
    $region29: #{visnet_forward.1} parent=1 // pred_fallthru
      _
    %383 = vsyncpa [#allocation4], 1

</llo_original>
